<compile_context>
chip_gen: v7x
topology: tpu7x:2x2x1
jax: 0.10.0
libtpu: 0.0.40
codegen_flags: <defaults>
</compile_context>

<pallas_src>
import functools

import jax
import jax.numpy as jnp
from jax.experimental import pallas as pl
from jax.experimental.pallas import tpu as pltpu


def _make_kernel(F, K, R, transpose_in_kernel):
    """One lane tile of the batch.

    Inputs (fused path):    u (tB, F), pos (tB, F), neg (tB, K*F)
    Inputs (fallback path): u (F, tB), pos (F, tB), neg (K*F, tB)
    Output: one (R, tB) block; rows 0..K-1 = acc_k, K = pqu, K+1 = ppi,
    K+2 = npi, remaining rows zero padding.
    """

    def kernel(u_ref, pos_ref, neg_ref, out_ref):
        if transpose_in_kernel:
            ut = u_ref[...].T      # (F, tB)  XLU swizzle, hidden under DMA
            pt = pos_ref[...].T    # (F, tB)
            nt = neg_ref[...].T    # (K*F, tB)
        else:
            ut = u_ref[...]
            pt = pos_ref[...]
            nt = neg_ref[...]

        # Sublane (F-axis) reductions -> lane-dense (1, tB) rows.
        pos_pred = jnp.sum(ut * pt, axis=0, keepdims=True)
        out_ref[K:K + 1, :] = jnp.sum(ut * ut, axis=0, keepdims=True)       # pqu
        out_ref[K + 1:K + 2, :] = jnp.sum(pt * pt, axis=0, keepdims=True)   # ppi

        # Static unroll over the K negatives: live set stays one (F, tB) slice.
        for k in range(K):
            nk = nt[k * F:(k + 1) * F, :]                                   # (F, tB)
            out_ref[k:k + 1, :] = pos_pred - jnp.sum(ut * nk, axis=0, keepdims=True)
            if k == K - 1:   # torch loop exposes only the last negative's npi
                out_ref[K + 2:K + 3, :] = jnp.sum(nk * nk, axis=0, keepdims=True)

        if R > K + 3:        # deterministic zero padding rows
            out_ref[K + 3:R, :] = jnp.zeros(
                (R - (K + 3), out_ref.shape[1]), jnp.float32)

    return kernel


@functools.lru_cache(maxsize=None)
def _inkernel_transpose_ok(F, KF):
    """Probe whether this Mosaic build lowers 2-D f32 transposes in-kernel."""
    try:
        def k(a_ref, b_ref, oa_ref, ob_ref):
            oa_ref[...] = a_ref[...].T
            ob_ref[...] = b_ref[...].T

        pl.pallas_call(
            k,
            out_shape=(jax.ShapeDtypeStruct((F, 128), jnp.float32),
                       jax.ShapeDtypeStruct((KF, 128), jnp.float32)),
        )(jnp.zeros((128, F), jnp.float32), jnp.zeros((128, KF), jnp.float32))
        return True
    except Exception:
        return False


def _lane_pad(n):
    return pl.cdiv(n, 128) * 128


def _block_bytes_per_row(F, K, R):
    # double-buffered, lane-padded VMEM bytes per batch element
    return 4 * (2 * (2 * _lane_pad(F) + _lane_pad(K * F)) + 2 * R)


def _pick_tile(B, F, K, R, budget_bytes=20 * 1024 * 1024):
    """Largest lane tile (multiple of 128) whose double-buffered blocks fit the
    VMEM budget (v7x-safe), keeping >=2 grid steps when B > 128 (dual TC) and
    keeping batch padding below one tile."""
    per_row = _block_bytes_per_row(F, K, R)
    t_max = max(128, min(8192, (budget_bytes // per_row) // 128 * 128))
    n_steps = pl.cdiv(B, t_max)
    if B > 128:
        n_steps = max(n_steps, 2)
    return pl.cdiv(pl.cdiv(B, n_steps), 128) * 128


def bpr_forward_pallas(user_factors, item_factors, users, pos_items, neg_items):
    """users: (B,), pos_items: (B,), neg_items: (B, K) int indices.

    Returns (acc, (pqu, ppi, nqu, npi)) matching BPRModel.forward.
    """
    B = users.shape[0]
    F = user_factors.shape[1]
    K = neg_items.shape[1]
    R = pl.cdiv(K + 3, 8) * 8                      # merged output rows

    tB = _pick_tile(B, F, K, R)
    Bp = pl.cdiv(B, tB) * tB
    pad = Bp - B

    # Pad the (tiny) index vectors, not the gathered data: no extra HBM pass.
    if pad:
        users = jnp.pad(users, (0, pad))
        pos_items = jnp.pad(pos_items, (0, pad))
        neg_items = jnp.pad(neg_items, ((0, pad), (0, 0)))

    # Embedding gathers stay in XLA, in natural layout (no XLA transposes).
    u = user_factors[users].astype(jnp.float32)                           # (Bp, F)
    pos = item_factors[pos_items].astype(jnp.float32)                     # (Bp, F)
    neg = item_factors[neg_items].astype(jnp.float32).reshape(Bp, K * F)  # free reshape

    fused = _inkernel_transpose_ok(F, K * F)
    if fused:
        in_specs = [
            pl.BlockSpec((tB, F), lambda i: (i, 0)),
            pl.BlockSpec((tB, F), lambda i: (i, 0)),
            pl.BlockSpec((tB, K * F), lambda i: (i, 0)),
        ]
        operands = (u, pos, neg)
    else:
        # Fallback: swizzle in XLA (one extra pass over the gathered data)
        # only if this Mosaic build cannot transpose in-kernel.
        in_specs = [
            pl.BlockSpec((F, tB), lambda i: (0, i)),
            pl.BlockSpec((F, tB), lambda i: (0, i)),
            pl.BlockSpec((K * F, tB), lambda i: (0, i)),
        ]
        operands = (u.T, pos.T, neg.T)

    grid = (Bp // tB,)

    # VMEM: double-buffered blocks + in-kernel transposed temporaries + slack.
    blk = _block_bytes_per_row(F, K, R) * tB
    tmp = 4 * tB * (K * F + 4 * F + 32)
    vmem_limit = min(blk + tmp + (8 << 20), 56 << 20)

    out = pl.pallas_call(
        _make_kernel(F, K, R, transpose_in_kernel=fused),
        grid=grid,
        in_specs=in_specs,
        out_specs=pl.BlockSpec((R, tB), lambda i: (0, i)),
        out_shape=jax.ShapeDtypeStruct((R, Bp), jnp.float32),
        compiler_params=pltpu.CompilerParams(
            dimension_semantics=("parallel",),
            vmem_limit_bytes=int(vmem_limit),
        ),
    )(*operands)

    acc = out[:K, :B].reshape(K * B)   # K-major, matches torch.cat over the K loop
    pqu = out[K, :B]
    ppi = out[K + 1, :B]
    npi = out[K + 2, :B]
    return acc, (pqu, ppi, pqu, npi)   # nqu == pqu (same users, last neg iter)


if __name__ == "__main__":
    # small synthetic problem
    n_users, n_items, n_factors = 50, 100, 32
    B, K = 8, 4

    key = jax.random.PRNGKey(0)
    k_uf, k_if, k_u, k_p, k_n = jax.random.split(key, 5)

    # deterministic param init, matching torch.nn.init.normal_(std=0.01)
    user_factors = 0.01 * jax.random.normal(k_uf, (n_users, n_factors), jnp.float32)
    item_factors = 0.01 * jax.random.normal(k_if, (n_items, n_factors), jnp.float32)

    users = jax.random.randint(k_u, (B,), 0, n_users, dtype=jnp.int32)
    pos_items = jax.random.randint(k_p, (B,), 0, n_items, dtype=jnp.int32)
    neg_items = jax.random.randint(k_n, (B, K), 0, n_items, dtype=jnp.int32)

    acc, (pqu, ppi, nqu, npi) = bpr_forward_pallas(
        user_factors, item_factors, users, pos_items, neg_items)
    jax.block_until_ready((acc, pqu, ppi, nqu, npi))

    # plain-JAX reference (mirrors the torch forward)
    u = user_factors[users]
    p = item_factors[pos_items]
    n = item_factors[neg_items.T]                 # (K, B, F)
    pos_pred = (u * p).sum(-1)
    neg_pred = (u[None] * n).sum(-1)              # (K, B)
    ref_acc = (pos_pred[None, :] - neg_pred).reshape(-1)

    assert jnp.allclose(acc, ref_acc, atol=1e-6)
    assert jnp.allclose(pqu, (u * u).sum(-1), atol=1e-6)
    assert jnp.allclose(ppi, (p * p).sum(-1), atol=1e-6)
    assert jnp.allclose(nqu, (u * u).sum(-1), atol=1e-6)
    assert jnp.allclose(npi, (n[-1] * n[-1]).sum(-1), atol=1e-6)

    print("KERNEL_OK")
</pallas_src>

<mosaic_0001>
module attributes {stable_mosaic.version = 11 : i64} {
  func.func @k(%arg0: memref<128x32xf32, #tpu.memory_space<vmem>>, %arg1: memref<128x128xf32, #tpu.memory_space<vmem>>, %arg2: memref<32x128xf32, #tpu.memory_space<vmem>>, %arg3: memref<128x128xf32, #tpu.memory_space<vmem>>) attributes {dimension_semantics = [], scalar_prefetch = 0 : i64, scratch_operands = 0 : i64, tpu.core_type = #tpu.core_type<tc>} {
    %c0 = arith.constant 0 : index
    %c0_0 = arith.constant 0 : index
    %0 = vector.load %arg0[%c0, %c0_0] : memref<128x32xf32, #tpu.memory_space<vmem>>, vector<128x32xf32>
    %1 = tpu.transpose %0, [1, 0] : vector<128x32xf32> -> vector<32x128xf32>
    %c0_1 = arith.constant 0 : index
    %c0_2 = arith.constant 0 : index
    %2 = vector.load %arg2[%c0_1, %c0_2] : memref<32x128xf32, #tpu.memory_space<vmem>>, vector<32x128xf32>
    tpu.vector_store %arg2[%c0_1, %c0_2], %1 {strides = array<i32>} : memref<32x128xf32, #tpu.memory_space<vmem>>, vector<32x128xf32>,
    %c0_3 = arith.constant 0 : index
    %c0_4 = arith.constant 0 : index
    %3 = vector.load %arg1[%c0_3, %c0_4] : memref<128x128xf32, #tpu.memory_space<vmem>>, vector<128x128xf32>
    %4 = tpu.transpose %3, [1, 0] : vector<128x128xf32> -> vector<128x128xf32>
    %c0_5 = arith.constant 0 : index
    %c0_6 = arith.constant 0 : index
    %5 = vector.load %arg3[%c0_5, %c0_6] : memref<128x128xf32, #tpu.memory_space<vmem>>, vector<128x128xf32>
    tpu.vector_store %arg3[%c0_5, %c0_6], %4 {strides = array<i32>} : memref<128x128xf32, #tpu.memory_space<vmem>>, vector<128x128xf32>,
    return
  }
}

module attributes {stable_mosaic.version = 11 : i64} {
  func.func @kernel(%arg0: i32, %arg1: memref<32x128xf32, #tpu.memory_space<vmem>>, %arg2: memref<32x128xf32, #tpu.memory_space<vmem>>, %arg3: memref<128x128xf32, #tpu.memory_space<vmem>>, %arg4: memref<8x128xf32, #tpu.memory_space<vmem>>) attributes {dimension_semantics = [#tpu.dimension_semantics<parallel>], iteration_bounds = array<i64: 1>, scalar_prefetch = 0 : i64, scratch_operands = 0 : i64, tpu.core_type = #tpu.core_type<tc>, window_params = [{transform_indices = @transform_0, window_bounds = array<i64: 32, 128>}, {transform_indices = @transform_1, window_bounds = array<i64: 32, 128>}, {transform_indices = @transform_2, window_bounds = array<i64: 128, 128>}, {transform_indices = @transform_3, window_bounds = array<i64: 8, 128>}]} {
    %c0 = arith.constant 0 : index
    %c0_0 = arith.constant 0 : index
    %0 = vector.load %arg1[%c0, %c0_0] : memref<32x128xf32, #tpu.memory_space<vmem>>, vector<32x128xf32>
    %c0_1 = arith.constant 0 : index
    %c0_2 = arith.constant 0 : index
    %1 = vector.load %arg2[%c0_1, %c0_2] : memref<32x128xf32, #tpu.memory_space<vmem>>, vector<32x128xf32>
    %c0_3 = arith.constant 0 : index
    %c0_4 = arith.constant 0 : index
    %2 = vector.load %arg3[%c0_3, %c0_4] : memref<128x128xf32, #tpu.memory_space<vmem>>, vector<128x128xf32>
    %3 = arith.mulf %0, %1 : vector<32x128xf32>
    %cst = arith.constant dense<0.000000e+00> : vector<128xf32>
    %4 = vector.multi_reduction <add>, %3, %cst [0] : vector<32x128xf32> to vector<128xf32>
    %5 = vector.shape_cast %4 : vector<128xf32> to vector<1x128xf32>
    %6 = arith.mulf %0, %0 : vector<32x128xf32>
    %cst_5 = arith.constant dense<0.000000e+00> : vector<128xf32>
    %7 = vector.multi_reduction <add>, %6, %cst_5 [0] : vector<32x128xf32> to vector<128xf32>
    %8 = vector.shape_cast %7 : vector<128xf32> to vector<1x128xf32>
    %c4 = arith.constant 4 : index
    %c0_6 = arith.constant 0 : index
    %9 = vector.load %arg4[%c4, %c0_6] : memref<8x128xf32, #tpu.memory_space<vmem>>, vector<1x128xf32>
    tpu.vector_store %arg4[%c4, %c0_6], %8 {strides = array<i32>} : memref<8x128xf32, #tpu.memory_space<vmem>>, vector<1x128xf32>,
    %10 = arith.mulf %1, %1 : vector<32x128xf32>
    %cst_7 = arith.constant dense<0.000000e+00> : vector<128xf32>
    %11 = vector.multi_reduction <add>, %10, %cst_7 [0] : vector<32x128xf32> to vector<128xf32>
    %12 = vector.shape_cast %11 : vector<128xf32> to vector<1x128xf32>
    %c5 = arith.constant 5 : index
    %c0_8 = arith.constant 0 : index
    %13 = vector.load %arg4[%c5, %c0_8] : memref<8x128xf32, #tpu.memory_space<vmem>>, vector<1x128xf32>
    tpu.vector_store %arg4[%c5, %c0_8], %12 {strides = array<i32>} : memref<8x128xf32, #tpu.memory_space<vmem>>, vector<1x128xf32>,
    %14 = vector.extract_strided_slice %2 {offsets = [0, 0], sizes = [32, 128], strides = [1, 1]} : vector<128x128xf32> to vector<32x128xf32>
    %15 = arith.mulf %0, %14 : vector<32x128xf32>
    %cst_9 = arith.constant dense<0.000000e+00> : vector<128xf32>
    %16 = vector.multi_reduction <add>, %15, %cst_9 [0] : vector<32x128xf32> to vector<128xf32>
    %17 = vector.shape_cast %16 : vector<128xf32> to vector<1x128xf32>
    %18 = arith.subf %5, %17 : vector<1x128xf32>
    %c0_10 = arith.constant 0 : index
    %c0_11 = arith.constant 0 : index
    %19 = vector.load %arg4[%c0_10, %c0_11] : memref<8x128xf32, #tpu.memory_space<vmem>>, vector<1x128xf32>
    tpu.vector_store %arg4[%c0_10, %c0_11], %18 {strides = array<i32>} : memref<8x128xf32, #tpu.memory_space<vmem>>, vector<1x128xf32>,
    %20 = vector.extract_strided_slice %2 {offsets = [32, 0], sizes = [32, 128], strides = [1, 1]} : vector<128x128xf32> to vector<32x128xf32>
    %21 = arith.mulf %0, %20 : vector<32x128xf32>
    %cst_12 = arith.constant dense<0.000000e+00> : vector<128xf32>
    %22 = vector.multi_reduction <add>, %21, %cst_12 [0] : vector<32x128xf32> to vector<128xf32>
    %23 = vector.shape_cast %22 : vector<128xf32> to vector<1x128xf32>
    %24 = arith.subf %5, %23 : vector<1x128xf32>
    %c1 = arith.constant 1 : index
    %c0_13 = arith.constant 0 : index
    %25 = vector.load %arg4[%c1, %c0_13] : memref<8x128xf32, #tpu.memory_space<vmem>>, vector<1x128xf32>
    tpu.vector_store %arg4[%c1, %c0_13], %24 {strides = array<i32>} : memref<8x128xf32, #tpu.memory_space<vmem>>, vector<1x128xf32>,
    %26 = vector.extract_strided_slice %2 {offsets = [64, 0], sizes = [32, 128], strides = [1, 1]} : vector<128x128xf32> to vector<32x128xf32>
    %27 = arith.mulf %0, %26 : vector<32x128xf32>
    %cst_14 = arith.constant dense<0.000000e+00> : vector<128xf32>
    %28 = vector.multi_reduction <add>, %27, %cst_14 [0] : vector<32x128xf32> to vector<128xf32>
    %29 = vector.shape_cast %28 : vector<128xf32> to vector<1x128xf32>
    %30 = arith.subf %5, %29 : vector<1x128xf32>
    %c2 = arith.constant 2 : index
    %c0_15 = arith.constant 0 : index
    %31 = vector.load %arg4[%c2, %c0_15] : memref<8x128xf32, #tpu.memory_space<vmem>>, vector<1x128xf32>
    tpu.vector_store %arg4[%c2, %c0_15], %30 {strides = array<i32>} : memref<8x128xf32, #tpu.memory_space<vmem>>, vector<1x128xf32>,
    %32 = vector.extract_strided_slice %2 {offsets = [96, 0], sizes = [32, 128], strides = [1, 1]} : vector<128x128xf32> to vector<32x128xf32>
    %33 = arith.mulf %0, %32 : vector<32x128xf32>
    %cst_16 = arith.constant dense<0.000000e+00> : vector<128xf32>
    %34 = vector.multi_reduction <add>, %33, %cst_16 [0] : vector<32x128xf32> to vector<128xf32>
    %35 = vector.shape_cast %34 : vector<128xf32> to vector<1x128xf32>
    %36 = arith.subf %5, %35 : vector<1x128xf32>
    %c3 = arith.constant 3 : index
    %c0_17 = arith.constant 0 : index
    %37 = vector.load %arg4[%c3, %c0_17] : memref<8x128xf32, #tpu.memory_space<vmem>>, vector<1x128xf32>
    tpu.vector_store %arg4[%c3, %c0_17], %36 {strides = array<i32>} : memref<8x128xf32, #tpu.memory_space<vmem>>, vector<1x128xf32>,
    %38 = arith.mulf %32, %32 : vector<32x128xf32>
    %cst_18 = arith.constant dense<0.000000e+00> : vector<128xf32>
    %39 = vector.multi_reduction <add>, %38, %cst_18 [0] : vector<32x128xf32> to vector<128xf32>
    %40 = vector.shape_cast %39 : vector<128xf32> to vector<1x128xf32>
    %c6 = arith.constant 6 : index
    %c0_19 = arith.constant 0 : index
    %41 = vector.load %arg4[%c6, %c0_19] : memref<8x128xf32, #tpu.memory_space<vmem>>, vector<1x128xf32>
    tpu.vector_store %arg4[%c6, %c0_19], %40 {strides = array<i32>} : memref<8x128xf32, #tpu.memory_space<vmem>>, vector<1x128xf32>,
    %cst_20 = arith.constant 0.000000e+00 : f32
    %42 = vector.broadcast %cst_20 : f32 to vector<1x128xf32>
    %c7 = arith.constant 7 : index
    %c0_21 = arith.constant 0 : index
    %43 = vector.load %arg4[%c7, %c0_21] : memref<8x128xf32, #tpu.memory_space<vmem>>, vector<1x128xf32>
    tpu.vector_store %arg4[%c7, %c0_21], %42 {strides = array<i32>} : memref<8x128xf32, #tpu.memory_space<vmem>>, vector<1x128xf32>,
    return
  }
  func.func @transform_0(%arg0: i32) -> (i32, i32) {
    %c0_i32 = arith.constant 0 : i32
    %c0_i32_0 = arith.constant 0 : i32
    return %c0_i32, %arg0 : i32, i32
  }
  func.func @transform_1(%arg0: i32) -> (i32, i32) {
    %c0_i32 = arith.constant 0 : i32
    %c0_i32_0 = arith.constant 0 : i32
    return %c0_i32, %arg0 : i32, i32
  }
  func.func @transform_2(%arg0: i32) -> (i32, i32) {
    %c0_i32 = arith.constant 0 : i32
    %c0_i32_0 = arith.constant 0 : i32
    return %c0_i32, %arg0 : i32, i32
  }
  func.func @transform_3(%arg0: i32) -> (i32, i32) {
    %c0_i32 = arith.constant 0 : i32
    %c0_i32_0 = arith.constant 0 : i32
    return %c0_i32, %arg0 : i32, i32
  }
}

</mosaic_0001>

<llo_original>
// kernel: tpu_custom_call.1
$region0: #{tpu_custom_call.1}
  #allocation0 [shape = 'u32[]', space=smem, size = 0x4, offset = 0x4, fixed_abs, tag = 'smem constant byte address 0x4 - core index']
  #allocation1 [shape = 'u32[144,128]{1,0:T(1,128)}', space=vmem, size = 0x12000, scoped, tag = 'internal scratch']
  %s0 = inlined_call_operand.vmem [shape: f32[128,32], index: 0, kind: input, shape index: {}]
  %s1 = inlined_call_operand.vmem [shape: f32[128,128], index: 1, kind: input, shape index: {}]
  %s2 = inlined_call_operand.hbm [shape: f32[32,128], index: 2, kind: output, shape index: {0}]
  %s3 = inlined_call_operand.hbm [shape: f32[128,128], index: 3, kind: output, shape index: {1}]
  %4 = xla_tuple %s2, %s3
  %s5 = sld [smem:[#allocation0]]
  $region26: #{tpu_custom_call.1} parent=0
    _
  %s7 = ssub.s32 1, %s5
  %s8 = scalar_select 0, %s7, %s5
  $region1: #{tpu_custom_call.1} parent=0
    #allocation2 [shape = 'u8[16384]{0}', space=vmem, size = 0x4000, scoped, tag = 'output window, operand 0, single buffered']
    #allocation3 [shape = 's32[1]{0}', space=sflag, size = 0x4, scoped, tag = 'scoped memory for tpu_custom_call.1']
    #allocation4 [shape = 'u8[65536]{0}', space=vmem, size = 0x10000, scoped, tag = 'output window, operand 1, single buffered']
    #allocation5 [shape = 's32[1]{0}', space=sflag, size = 0x4, scoped, tag = 'scoped memory for tpu_custom_call.1']
    %9 = vsyncpa [#allocation3], 0
    %10 = vsyncpa [#allocation5], 0
    // Predicated region
    $region2: #{tpu_custom_call.1} parent=1 // pred_check
      _
    $region3: #{tpu_custom_call.1} parent=1 // pred_check_branch
      %12 = sbr.rel (0) target = $region5
    $region4: #{tpu_custom_call.1} parent=1 // pred_region
      _
    $region5: #{tpu_custom_call.1} parent=1 // pred_fallthru
      _
    // Predicated region
    $region6: #{tpu_custom_call.1} parent=1 // pred_check
      _
    $region7: #{tpu_custom_call.1} parent=1 // pred_check_branch
      %14 = sbr.rel (0) target = $region9
    $region8: #{tpu_custom_call.1} parent=1 // pred_region
      _
    $region9: #{tpu_custom_call.1} parent=1 // pred_fallthru
      _
    %v15 = vld [vmem:[%s0] sm:$0xff]
    %v16 = vld [vmem:[%s0 + $0x8] sm:$0xff]
    %v17 = vld [vmem:[%s0 + $0x10] sm:$0xff]
    %v18 = vld [vmem:[%s0 + $0x18] sm:$0xff]
    %v19 = vld [vmem:[%s0 + $0x20] sm:$0xff]
    %v20 = vld [vmem:[%s0 + $0x28] sm:$0xff]
    %v21 = vld [vmem:[%s0 + $0x30] sm:$0xff]
    %v22 = vld [vmem:[%s0 + $0x38] sm:$0xff]
    %v23 = vld [vmem:[%s0 + $0x40] sm:$0xff]
    %v24 = vld [vmem:[%s0 + $0x48] sm:$0xff]
    %v25 = vld [vmem:[%s0 + $0x50] sm:$0xff]
    %v26 = vld [vmem:[%s0 + $0x58] sm:$0xff]
    %v27 = vld [vmem:[%s0 + $0x60] sm:$0xff]
    %v28 = vld [vmem:[%s0 + $0x68] sm:$0xff]
    %v29 = vld [vmem:[%s0 + $0x70] sm:$0xff]
    %v30 = vld [vmem:[%s0 + $0x78] sm:$0xff]
    %31 = vxpose.xlu0.b32.start [1/16] %v15, 128
    %32 = vxpose.xlu0.b32.cont [2/16] %v16, 128
    %33 = vxpose.xlu0.b32.cont [3/16] %v17, 128
    %34 = vxpose.xlu0.b32.cont [4/16] %v18, 128
    %35 = vxpose.xlu0.b32.cont [5/16] %v19, 128
    %36 = vxpose.xlu0.b32.cont [6/16] %v20, 128
    %37 = vxpose.xlu0.b32.cont [7/16] %v21, 128
    %38 = vxpose.xlu0.b32.cont [8/16] %v22, 128
    %39 = vxpose.xlu0.b32.cont [9/16] %v23, 128
    %40 = vxpose.xlu0.b32.cont [10/16] %v24, 128
    %41 = vxpose.xlu0.b32.cont [11/16] %v25, 128
    %42 = vxpose.xlu0.b32.cont [12/16] %v26, 128
    %43 = vxpose.xlu0.b32.cont [13/16] %v27, 128
    %44 = vxpose.xlu0.b32.cont [14/16] %v28, 128
    %45 = vxpose.xlu0.b32.cont [15/16] %v29, 128
    %46 = vxpose.xlu0.b32.end [16/16] %v30, 128
    %v47 = vpop.trf.xlu0
    %v48 = vpop.trf.xlu0
    %v49 = vpop.trf.xlu0
    %v50 = vpop.trf.xlu0
    %v51 = vpop.trf.xlu0
    %v52 = vpop.trf.xlu0
    %v53 = vpop.trf.xlu0
    %v54 = vpop.trf.xlu0
    %v55 = vpop.trf.xlu0
    %v56 = vpop.trf.xlu0
    %v57 = vpop.trf.xlu0
    %v58 = vpop.trf.xlu0
    %v59 = vpop.trf.xlu0
    %v60 = vpop.trf.xlu0
    %v61 = vpop.trf.xlu0
    %v62 = vpop.trf.xlu0
    %63 = vst [vmem:[#allocation2] sm:$0xff] %v47
    %64 = vst [vmem:[#allocation2 + $0x8] sm:$0xff] %v48
    %65 = vst [vmem:[#allocation2 + $0x10] sm:$0xff] %v49
    %66 = vst [vmem:[#allocation2 + $0x18] sm:$0xff] %v50
    %v67 = vld [vmem:[%s1] sm:$0xff]
    %v68 = vld [vmem:[%s1 + $0x8] sm:$0xff]
    %v69 = vld [vmem:[%s1 + $0x10] sm:$0xff]
    %v70 = vld [vmem:[%s1 + $0x18] sm:$0xff]
    %v71 = vld [vmem:[%s1 + $0x20] sm:$0xff]
    %v72 = vld [vmem:[%s1 + $0x28] sm:$0xff]
    %v73 = vld [vmem:[%s1 + $0x30] sm:$0xff]
    %v74 = vld [vmem:[%s1 + $0x38] sm:$0xff]
    %v75 = vld [vmem:[%s1 + $0x40] sm:$0xff]
    %v76 = vld [vmem:[%s1 + $0x48] sm:$0xff]
    %v77 = vld [vmem:[%s1 + $0x50] sm:$0xff]
    %v78 = vld [vmem:[%s1 + $0x58] sm:$0xff]
    %v79 = vld [vmem:[%s1 + $0x60] sm:$0xff]
    %v80 = vld [vmem:[%s1 + $0x68] sm:$0xff]
    %v81 = vld [vmem:[%s1 + $0x70] sm:$0xff]
    %v82 = vld [vmem:[%s1 + $0x78] sm:$0xff]
    %83 = vxpose.xlu0.b32.start [1/16] %v67, 128
    %84 = vxpose.xlu0.b32.cont [2/16] %v68, 128
    %85 = vxpose.xlu0.b32.cont [3/16] %v69, 128
    %86 = vxpose.xlu0.b32.cont [4/16] %v70, 128
    %87 = vxpose.xlu0.b32.cont [5/16] %v71, 128
    %88 = vxpose.xlu0.b32.cont [6/16] %v72, 128
    %89 = vxpose.xlu0.b32.cont [7/16] %v73, 128
    %90 = vxpose.xlu0.b32.cont [8/16] %v74, 128
    %91 = vxpose.xlu0.b32.cont [9/16] %v75, 128
    %92 = vxpose.xlu0.b32.cont [10/16] %v76, 128
    %93 = vxpose.xlu0.b32.cont [11/16] %v77, 128
    %94 = vxpose.xlu0.b32.cont [12/16] %v78, 128
    %95 = vxpose.xlu0.b32.cont [13/16] %v79, 128
    %96 = vxpose.xlu0.b32.cont [14/16] %v80, 128
    %97 = vxpose.xlu0.b32.cont [15/16] %v81, 128
    %98 = vxpose.xlu0.b32.end [16/16] %v82, 128
    %v99 = vpop.trf.xlu0
    %v100 = vpop.trf.xlu0
    %v101 = vpop.trf.xlu0
    %v102 = vpop.trf.xlu0
    %v103 = vpop.trf.xlu0
    %v104 = vpop.trf.xlu0
    %v105 = vpop.trf.xlu0
    %v106 = vpop.trf.xlu0
    %v107 = vpop.trf.xlu0
    %v108 = vpop.trf.xlu0
    %v109 = vpop.trf.xlu0
    %v110 = vpop.trf.xlu0
    %v111 = vpop.trf.xlu0
    %v112 = vpop.trf.xlu0
    %v113 = vpop.trf.xlu0
    %v114 = vpop.trf.xlu0
    %115 = vst [vmem:[#allocation4] sm:$0xff] %v99
    %116 = vst [vmem:[#allocation4 + $0x8] sm:$0xff] %v100
    %117 = vst [vmem:[#allocation4 + $0x10] sm:$0xff] %v101
    %118 = vst [vmem:[#allocation4 + $0x18] sm:$0xff] %v102
    %119 = vst [vmem:[#allocation4 + $0x20] sm:$0xff] %v103
    %120 = vst [vmem:[#allocation4 + $0x28] sm:$0xff] %v104
    %121 = vst [vmem:[#allocation4 + $0x30] sm:$0xff] %v105
    %122 = vst [vmem:[#allocation4 + $0x38] sm:$0xff] %v106
    %123 = vst [vmem:[#allocation4 + $0x40] sm:$0xff] %v107
    %124 = vst [vmem:[#allocation4 + $0x48] sm:$0xff] %v108
    %125 = vst [vmem:[#allocation4 + $0x50] sm:$0xff] %v109
    %126 = vst [vmem:[#allocation4 + $0x58] sm:$0xff] %v110
    %127 = vst [vmem:[#allocation4 + $0x60] sm:$0xff] %v111
    %128 = vst [vmem:[#allocation4 + $0x68] sm:$0xff] %v112
    %129 = vst [vmem:[#allocation4 + $0x70] sm:$0xff] %v113
    %130 = vst [vmem:[#allocation4 + $0x78] sm:$0xff] %v114
    // Predicated region
    $region10: #{tpu_custom_call.1} parent=1 // pred_check
      _
    $region11: #{tpu_custom_call.1} parent=1 // pred_check_branch
      %132 = sbr.rel (0) target = $region13
    $region12: #{tpu_custom_call.1} parent=1 // pred_region
      %s134 = ssub.s32 512, 512
      %135 = vsyncadd [#allocation3], %s134
      %s136 = sshll.u32 [#allocation2], 4
      %s137 = int_to_ptr.vmem [resolvable:$true] %s136
      %142 = dma.vmem_to_hbm [thread:$0]  %s137, 512, %s2, [#allocation3], 128, 128, 8
    $region13: #{tpu_custom_call.1} parent=1 // pred_fallthru
      _
    // Predicated region
    $region14: #{tpu_custom_call.1} parent=1 // pred_check
      _
    $region15: #{tpu_custom_call.1} parent=1 // pred_check_branch
      %144 = sbr.rel (0) target = $region17
    $region16: #{tpu_custom_call.1} parent=1 // pred_region
      %s146 = ssub.s32 2048, 2048
      %147 = vsyncadd [#allocation5], %s146
      %s148 = sshll.u32 [#allocation4], 4
      %s149 = int_to_ptr.vmem [resolvable:$true] %s148
      %154 = dma.vmem_to_hbm [thread:$0]  %s149, 2048, %s3, [#allocation5], 128, 128, 8
    $region17: #{tpu_custom_call.1} parent=1 // pred_fallthru
      _
    // Predicated region
    $region18: #{tpu_custom_call.1} parent=1 // pred_check
      _
    $region19: #{tpu_custom_call.1} parent=1 // pred_check_branch
      %156 = sbr.rel (0) target = $region21
    $region20: #{tpu_custom_call.1} parent=1 // pred_region
      %157 = dma.done [#allocation3], 512
    $region21: #{tpu_custom_call.1} parent=1 // pred_fallthru
      _
    // Predicated region
    $region22: #{tpu_custom_call.1} parent=1 // pred_check
      _
    $region23: #{tpu_custom_call.1} parent=1 // pred_check_branch
      %159 = sbr.rel (0) target = $region25
    $region24: #{tpu_custom_call.1} parent=1 // pred_region
      %160 = dma.done [#allocation5], 2048
    $region25: #{tpu_custom_call.1} parent=1 // pred_fallthru
      _
    %161 = vsyncpa [#allocation3], 1
    %162 = vsyncpa [#allocation5], 1

// kernel: tpu_custom_call.1
$region0: #{tpu_custom_call.1}
  #allocation0 [shape = 'u32[]', space=smem, size = 0x4, offset = 0x4, fixed_abs, tag = 'smem constant byte address 0x4 - core index']
  #allocation1 [shape = 'u32[144,128]{1,0:T(1,128)}', space=vmem, size = 0x12000, scoped, tag = 'internal scratch']
  %s0 = inlined_call_operand.hbm [shape: f32[32,128], index: 0, kind: input, shape index: {}]
  %s1 = inlined_call_operand.hbm [shape: f32[32,128], index: 1, kind: input, shape index: {}]
  %s2 = inlined_call_operand.hbm [shape: f32[128,128], index: 2, kind: input, shape index: {}]
  %s3 = inlined_call_operand.hbm [shape: f32[8,128], index: 3, kind: output, shape index: {}]
  %s4 = sld [smem:[#allocation0]]
  $region34: #{tpu_custom_call.1} parent=0
    _
  %s6 = ssub.s32 1, %s4
  %s7 = scalar_select 0, %s6, %s4
  $region1: #{tpu_custom_call.1} parent=0
    #allocation2 [shape = 'u8[16384]{0}', space=vmem, size = 0x4000, scoped, tag = 'input window, operand 0, single buffered']
    #allocation3 [shape = 's32[1]{0}', space=sflag, size = 0x4, scoped, tag = 'scoped memory for tpu_custom_call.1']
    #allocation4 [shape = 's32[1]{0}', space=sflag, size = 0x4, scoped, tag = 'scoped memory for tpu_custom_call.1']
    #allocation5 [shape = 'u8[16384]{0}', space=vmem, size = 0x4000, scoped, tag = 'input window, operand 1, single buffered']
    #allocation6 [shape = 's32[1]{0}', space=sflag, size = 0x4, scoped, tag = 'scoped memory for tpu_custom_call.1']
    #allocation7 [shape = 'u8[65536]{0}', space=vmem, size = 0x10000, scoped, tag = 'input window, operand 2, single buffered']
    #allocation8 [shape = 'u8[4096]{0}', space=vmem, size = 0x1000, scoped, tag = 'output window, operand 0, single buffered']
    %8 = vsyncpa [#allocation3], 0
    %9 = vsyncpa [#allocation6], 0
    %10 = vsyncpa [#allocation4], 0
    // Predicated region
    $region2: #{tpu_custom_call.1} parent=1 // pred_check
      _
    $region3: #{tpu_custom_call.1} parent=1 // pred_check_branch
      %12 = sbr.rel (0) target = $region5
    $region4: #{tpu_custom_call.1} parent=1 // pred_region
      %s14 = ssub.s32 512, 512
      %15 = vsyncadd [#allocation3], %s14
      %s16 = sshll.u32 [#allocation2], 4
      %s17 = int_to_ptr.vmem [resolvable:$true] %s16
      %22 = dma.hbm_to_vmem [thread:$0]  %s0, 512, %s17, [#allocation3], 128, 128, 8
    $region5: #{tpu_custom_call.1} parent=1 // pred_fallthru
      _
    // Predicated region
    $region6: #{tpu_custom_call.1} parent=1 // pred_check
      _
    $region7: #{tpu_custom_call.1} parent=1 // pred_check_branch
      %24 = sbr.rel (0) target = $region9
    $region8: #{tpu_custom_call.1} parent=1 // pred_region
      %s26 = ssub.s32 512, 512
      %27 = vsyncadd [#allocation6], %s26
      %s28 = sshll.u32 [#allocation5], 4
      %s29 = int_to_ptr.vmem [resolvable:$true] %s28
      %34 = dma.hbm_to_vmem [thread:$0]  %s1, 512, %s29, [#allocation6], 128, 128, 8
    $region9: #{tpu_custom_call.1} parent=1 // pred_fallthru
      _
    // Predicated region
    $region10: #{tpu_custom_call.1} parent=1 // pred_check
      _
    $region11: #{tpu_custom_call.1} parent=1 // pred_check_branch
      %36 = sbr.rel (0) target = $region13
    $region12: #{tpu_custom_call.1} parent=1 // pred_region
      %s38 = ssub.s32 2048, 2048
      %39 = vsyncadd [#allocation6], %s38
      %s40 = sshll.u32 [#allocation7], 4
      %s41 = int_to_ptr.vmem [resolvable:$true] %s40
      %46 = dma.hbm_to_vmem [thread:$0]  %s2, 2048, %s41, [#allocation6], 128, 128, 8
    $region13: #{tpu_custom_call.1} parent=1 // pred_fallthru
      _
    // Predicated region
    $region14: #{tpu_custom_call.1} parent=1 // pred_check
      _
    $region15: #{tpu_custom_call.1} parent=1 // pred_check_branch
      %48 = sbr.rel (0) target = $region17
    $region16: #{tpu_custom_call.1} parent=1 // pred_region
      %49 = dma.done [#allocation3], 512
    $region17: #{tpu_custom_call.1} parent=1 // pred_fallthru
      _
    // Predicated region
    $region18: #{tpu_custom_call.1} parent=1 // pred_check
      _
    $region19: #{tpu_custom_call.1} parent=1 // pred_check_branch
      %51 = sbr.rel (0) target = $region21
    $region20: #{tpu_custom_call.1} parent=1 // pred_region
      %52 = dma.done [#allocation6], 512
    $region21: #{tpu_custom_call.1} parent=1 // pred_fallthru
      _
    // Predicated region
    $region22: #{tpu_custom_call.1} parent=1 // pred_check
      _
    $region23: #{tpu_custom_call.1} parent=1 // pred_check_branch
      %54 = sbr.rel (0) target = $region25
    $region24: #{tpu_custom_call.1} parent=1 // pred_region
      %55 = dma.done [#allocation6], 2048
    $region25: #{tpu_custom_call.1} parent=1 // pred_fallthru
      _
    %v56 = vld [vmem:[#allocation2] sm:$0xff]
    %v57 = vld [vmem:[#allocation2 + $0x8] sm:$0xff]
    %v58 = vld [vmem:[#allocation2 + $0x10] sm:$0xff]
    %v59 = vld [vmem:[#allocation2 + $0x18] sm:$0xff]
    %v60 = vld [vmem:[#allocation5] sm:$0xff]
    %v61 = vld [vmem:[#allocation5 + $0x8] sm:$0xff]
    %v62 = vld [vmem:[#allocation5 + $0x10] sm:$0xff]
    %v63 = vld [vmem:[#allocation5 + $0x18] sm:$0xff]
    %v64 = vld [vmem:[#allocation7] sm:$0xff]
    %v65 = vld [vmem:[#allocation7 + $0x8] sm:$0xff]
    %v66 = vld [vmem:[#allocation7 + $0x10] sm:$0xff]
    %v67 = vld [vmem:[#allocation7 + $0x18] sm:$0xff]
    %v68 = vld [vmem:[#allocation7 + $0x20] sm:$0xff]
    %v69 = vld [vmem:[#allocation7 + $0x28] sm:$0xff]
    %v70 = vld [vmem:[#allocation7 + $0x30] sm:$0xff]
    %v71 = vld [vmem:[#allocation7 + $0x38] sm:$0xff]
    %v72 = vld [vmem:[#allocation7 + $0x40] sm:$0xff]
    %v73 = vld [vmem:[#allocation7 + $0x48] sm:$0xff]
    %v74 = vld [vmem:[#allocation7 + $0x50] sm:$0xff]
    %v75 = vld [vmem:[#allocation7 + $0x58] sm:$0xff]
    %v76 = vld [vmem:[#allocation7 + $0x60] sm:$0xff]
    %v77 = vld [vmem:[#allocation7 + $0x68] sm:$0xff]
    %v78 = vld [vmem:[#allocation7 + $0x70] sm:$0xff]
    %v79 = vld [vmem:[#allocation7 + $0x78] sm:$0xff]
    %v80 = vmul.f32 %v56, %v60
    %v81 = vmul.f32 %v57, %v61
    %v82 = vmul.f32 %v58, %v62
    %v83 = vmul.f32 %v59, %v63
    %v84 = vadd.f32 %v80, %v81
    %v85 = vadd.f32 %v84, %v82
    %v86 = vadd.f32 %v85, %v83
    %v87 = vrot.slane %v86, 4
    %v88 = vadd.f32 %v86, %v87
    %v89 = vrot.slane %v88, 2
    %v90 = vadd.f32 %v88, %v89
    %v91 = vrot.slane %v90, 1
    %v92 = vadd.f32 %v90, %v91
    %v93 = vmul.f32 %v56, %v56
    %v94 = vmul.f32 %v57, %v57
    %v95 = vmul.f32 %v58, %v58
    %v96 = vmul.f32 %v59, %v59
    %v97 = vadd.f32 %v93, %v94
    %v98 = vadd.f32 %v97, %v95
    %v99 = vadd.f32 %v98, %v96
    %v100 = vrot.slane %v99, 4
    %v101 = vadd.f32 %v99, %v100
    %v102 = vrot.slane %v101, 2
    %v103 = vadd.f32 %v101, %v102
    %v104 = vrot.slane %v103, 1
    %v105 = vadd.f32 %v103, %v104
    %106 = vst [vmem:[#allocation8 + $0x4] sm:$0x1] %v105
    %v107 = vmul.f32 %v60, %v60
    %v108 = vmul.f32 %v61, %v61
    %v109 = vmul.f32 %v62, %v62
    %v110 = vmul.f32 %v63, %v63
    %v111 = vadd.f32 %v107, %v108
    %v112 = vadd.f32 %v111, %v109
    %v113 = vadd.f32 %v112, %v110
    %v114 = vrot.slane %v113, 4
    %v115 = vadd.f32 %v113, %v114
    %v116 = vrot.slane %v115, 2
    %v117 = vadd.f32 %v115, %v116
    %v118 = vrot.slane %v117, 1
    %v119 = vadd.f32 %v117, %v118
    %120 = vst [vmem:[#allocation8 + $0x5] sm:$0x1] %v119
    %v121 = vmul.f32 %v56, %v64
    %v122 = vmul.f32 %v57, %v65
    %v123 = vmul.f32 %v58, %v66
    %v124 = vmul.f32 %v59, %v67
    %v125 = vadd.f32 %v121, %v122
    %v126 = vadd.f32 %v125, %v123
    %v127 = vadd.f32 %v126, %v124
    %v128 = vrot.slane %v127, 4
    %v129 = vadd.f32 %v127, %v128
    %v130 = vrot.slane %v129, 2
    %v131 = vadd.f32 %v129, %v130
    %v132 = vrot.slane %v131, 1
    %v133 = vadd.f32 %v131, %v132
    %v134 = vsub.f32 %v92, %v133
    %135 = vst [vmem:[#allocation8] sm:$0x1] %v134
    %v136 = vmul.f32 %v56, %v68
    %v137 = vmul.f32 %v57, %v69
    %v138 = vmul.f32 %v58, %v70
    %v139 = vmul.f32 %v59, %v71
    %v140 = vadd.f32 %v136, %v137
    %v141 = vadd.f32 %v140, %v138
    %v142 = vadd.f32 %v141, %v139
    %v143 = vrot.slane %v142, 4
    %v144 = vadd.f32 %v142, %v143
    %v145 = vrot.slane %v144, 2
    %v146 = vadd.f32 %v144, %v145
    %v147 = vrot.slane %v146, 1
    %v148 = vadd.f32 %v146, %v147
    %v149 = vsub.f32 %v92, %v148
    %150 = vst [vmem:[#allocation8 + $0x1] sm:$0x1] %v149
    %v151 = vmul.f32 %v56, %v72
    %v152 = vmul.f32 %v57, %v73
    %v153 = vmul.f32 %v58, %v74
    %v154 = vmul.f32 %v59, %v75
    %v155 = vadd.f32 %v151, %v152
    %v156 = vadd.f32 %v155, %v153
    %v157 = vadd.f32 %v156, %v154
    %v158 = vrot.slane %v157, 4
    %v159 = vadd.f32 %v157, %v158
    %v160 = vrot.slane %v159, 2
    %v161 = vadd.f32 %v159, %v160
    %v162 = vrot.slane %v161, 1
    %v163 = vadd.f32 %v161, %v162
    %v164 = vsub.f32 %v92, %v163
    %165 = vst [vmem:[#allocation8 + $0x2] sm:$0x1] %v164
    %v166 = vmul.f32 %v56, %v76
    %v167 = vmul.f32 %v57, %v77
    %v168 = vmul.f32 %v58, %v78
    %v169 = vmul.f32 %v59, %v79
    %v170 = vadd.f32 %v166, %v167
    %v171 = vadd.f32 %v170, %v168
    %v172 = vadd.f32 %v171, %v169
    %v173 = vrot.slane %v172, 4
    %v174 = vadd.f32 %v172, %v173
    %v175 = vrot.slane %v174, 2
    %v176 = vadd.f32 %v174, %v175
    %v177 = vrot.slane %v176, 1
    %v178 = vadd.f32 %v176, %v177
    %v179 = vsub.f32 %v92, %v178
    %180 = vst [vmem:[#allocation8 + $0x3] sm:$0x1] %v179
    %v181 = vmul.f32 %v76, %v76
    %v182 = vmul.f32 %v77, %v77
    %v183 = vmul.f32 %v78, %v78
    %v184 = vmul.f32 %v79, %v79
    %v185 = vadd.f32 %v181, %v182
    %v186 = vadd.f32 %v185, %v183
    %v187 = vadd.f32 %v186, %v184
    %v188 = vrot.slane %v187, 4
    %v189 = vadd.f32 %v187, %v188
    %v190 = vrot.slane %v189, 2
    %v191 = vadd.f32 %v189, %v190
    %v192 = vrot.slane %v191, 1
    %v193 = vadd.f32 %v191, %v192
    %194 = vst [vmem:[#allocation8 + $0x6] sm:$0x1] %v193
    %195 = vst [vmem:[#allocation8 + $0x7] sm:$0x1] 0.0
    // Predicated region
    $region26: #{tpu_custom_call.1} parent=1 // pred_check
      _
    $region27: #{tpu_custom_call.1} parent=1 // pred_check_branch
      %197 = sbr.rel (0) target = $region29
    $region28: #{tpu_custom_call.1} parent=1 // pred_region
      %s199 = ssub.s32 128, 128
      %200 = vsyncadd [#allocation4], %s199
      %s202 = sshll.u32 [#allocation8], 4
      %s203 = int_to_ptr.vmem [resolvable:$true] %s202
      %205 = dma.vmem_to_hbm [thread:$0]  %s203, 128, %s3, [#allocation4]
    $region29: #{tpu_custom_call.1} parent=1 // pred_fallthru
      _
    // Predicated region
    $region30: #{tpu_custom_call.1} parent=1 // pred_check
      _
    $region31: #{tpu_custom_call.1} parent=1 // pred_check_branch
      %207 = sbr.rel (0) target = $region33
    $region32: #{tpu_custom_call.1} parent=1 // pred_region
      %208 = dma.done [#allocation4], 128
    $region33: #{tpu_custom_call.1} parent=1 // pred_fallthru
      _
    %209 = vsyncpa [#allocation3], 1
    %210 = vsyncpa [#allocation6], 1
    %211 = vsyncpa [#allocation4], 1

</llo_original>
